<compile_context>
chip_gen: v7x
topology: tpu7x:2x2x1
jax: 0.10.0
libtpu: 0.0.40
codegen_flags: <defaults>
</compile_context>

<pallas_src>
import math

import jax
import jax.numpy as jnp
from jax.experimental import pallas as pl
from jax.experimental.pallas import tpu as pltpu


def _round_up(n, m):
    return ((n + m - 1) // m) * m


# ----------------------------------------------------------------------------- kernel
def _d1mlp_kernel(x_ref,                      # VMEM (1, TILE_B)        x column 0
                  w1_ref, b1_ref,             # VMEM (HP, 1), (HP, 1)   scale pre-folded
                  wh_ref, bh_ref,             # VMEM (HP, HP), (HP, 1)
                  wo_ref, bo_ref,             # VMEM (OP, HP), (OP, 1)
                  neg_ref, rng_ref,           # VMEM (OP, 1), (OP, 1)
                  out_ref):                   # VMEM (OP, TILE_B)
    x = x_ref[...]                                                    # (1, TILE_B)

    # Layer 1: Linear(1 -> H). K=1 contraction == outer product, done on the
    # VPU as a broadcast multiply-add instead of an MXU round-trip.
    h = jnp.maximum(w1_ref[...] * x + b1_ref[...], 0.0)              # (HP, TILE_B)

    # Layer 2: Linear(H -> H) + ReLU on the MXU: h2^T = Wh @ h^T.
    h = jnp.dot(wh_ref[...], h.astype(wh_ref.dtype),
                preferred_element_type=jnp.float32) + bh_ref[...]
    h = jnp.maximum(h, 0.0)                                           # (HP, TILE_B)

    # Output layer: o^T = Wo @ h^T (OP = 8 sublanes, lane-dense store).
    o = jnp.dot(wo_ref[...], h.astype(wo_ref.dtype),
                preferred_element_type=jnp.float32) + bo_ref[...]     # (OP, TILE_B)

    # sigmoid(o) * range + neg_lim; padded rows stay 0 (rng/neg zero-padded)
    # and are sliced off in the wrapper.
    out_ref[...] = (jax.nn.sigmoid(o) * rng_ref[...] + neg_ref[...]).astype(out_ref.dtype)


# ----------------------------------------------------------------------------- params
def _init_linear(key, fan_in, fan_out):
    """Deterministic init mimicking torch.nn.Linear (uniform +/- 1/sqrt(fan_in))."""
    kw, kb = jax.random.split(key)
    bound = 1.0 / math.sqrt(fan_in)
    w = jax.random.uniform(kw, (fan_out, fan_in), jnp.float32, -bound, bound)
    b = jax.random.uniform(kb, (fan_out,), jnp.float32, -bound, bound)
    return w, b


def make_params(n_output, n_hidden, neg_lim, pos_lim, key):
    """Raw params in torch layout. Inner MLP input dim is 1 (D1MLP semantics)."""
    k1, k2, k3 = jax.random.split(key, 3)
    w1, b1 = _init_linear(k1, 1, n_hidden)          # (H, 1), (H,)
    wh, bh = _init_linear(k2, n_hidden, n_hidden)   # (H, H), (H,)
    wo, bo = _init_linear(k3, n_hidden, n_output)   # (O, H), (O,)
    neg = jnp.asarray(neg_lim, jnp.float32)
    pos = jnp.asarray(pos_lim, jnp.float32)
    input_scale = jnp.asarray([0.3, 50.0], jnp.float32)
    return (w1, b1, wh, bh, wo, bo, neg, pos, input_scale)


def prepare_kernel_params(raw, *, matmul_dtype=jnp.float32):
    """Pad / fold-scale once, producing kernel-ready operands (transposed layout).

    matmul_dtype: dtype the Wh/Wo matmul inputs are stored/computed in
    (jnp.float32 or jnp.bfloat16; accumulation is always f32).
    """
    w1, b1, wh, bh, wo, bo, neg, pos, input_scale = raw
    H = wh.shape[0]
    O = wo.shape[0]
    # Features live in sublanes now -> only 8-sublane alignment needed
    # (16 for bf16 so the contraction dim packs cleanly).
    feat_align = 16 if matmul_dtype == jnp.bfloat16 else 8
    HP = max(feat_align, _round_up(H, feat_align))
    OP = max(8, _round_up(O, 8))

    f32 = jnp.float32
    # Fold 1/input_scale[0] into W1; lay out as an (HP, 1) column for the VPU MAC.
    w1_col = jnp.zeros((HP, 1), f32).at[:H, 0].set(w1[:, 0] / input_scale[0])
    b1_col = jnp.zeros((HP, 1), f32).at[:H, 0].set(b1)

    # Natural torch layouts: h2^T = Wh @ h^T, o^T = Wo @ h^T (no transposes).
    wh_p = jnp.zeros((HP, HP), f32).at[:H, :H].set(wh).astype(matmul_dtype)
    bh_col = jnp.zeros((HP, 1), f32).at[:H, 0].set(bh)

    wo_p = jnp.zeros((OP, HP), f32).at[:O, :H].set(wo).astype(matmul_dtype)
    bo_col = jnp.zeros((OP, 1), f32).at[:O, 0].set(bo)

    neg_col = jnp.zeros((OP, 1), f32).at[:O, 0].set(neg)
    rng_col = jnp.zeros((OP, 1), f32).at[:O, 0].set(pos - neg)

    return dict(w1=w1_col, b1=b1_col, wh=wh_p, bh=bh_col, wo=wo_p, bo=bo_col,
                neg=neg_col, rng=rng_col, n_output=O)


# ----------------------------------------------------------------------------- wrapper
def _choose_tiling(B, max_tile_b):
    """tile_b multiple of 128 (lanes); remainder spread across tiles; >=2 grid
    steps whenever B > 128 so v7x's two TensorCores both get work."""
    n_tiles = max(pl.cdiv(B, max_tile_b), 2 if B > 128 else 1)
    tile_b = _round_up(pl.cdiv(B, n_tiles), 128)
    n_tiles = pl.cdiv(B, tile_b)           # re-derive; keeps padding < ~2*128 rows
    return tile_b, n_tiles * tile_b


def d1mlp_forward(x, kp, *, max_tile_b=4096):
    """x: (B, F) float.  Returns (B, n_output) float32."""
    B = x.shape[0]
    HP = kp["wh"].shape[0]
    OP = kp["wo"].shape[0]
    O = kp["n_output"]

    # D1MLP only uses column 0 -> slice before the kernel so only that column
    # is streamed HBM -> VMEM; lay batch along lanes.
    x0 = x[:, 0].astype(jnp.float32).reshape(1, B)           # (1, B)

    tile_b, b_pad = _choose_tiling(B, max_tile_b)
    if b_pad != B:
        x0 = jnp.pad(x0, ((0, 0), (0, b_pad - B)))

    const = lambda i: (0, 0)                                  # weights stay resident
    out = pl.pallas_call(
        _d1mlp_kernel,
        out_shape=jax.ShapeDtypeStruct((OP, b_pad), jnp.float32),
        grid=(b_pad // tile_b,),
        in_specs=[
            pl.BlockSpec((1, tile_b), lambda i: (0, i)),      # x column (batch in lanes)
            pl.BlockSpec((HP, 1), const),                     # W1 col (scale folded)
            pl.BlockSpec((HP, 1), const),                     # b1
            pl.BlockSpec((HP, HP), const),                    # Wh
            pl.BlockSpec((HP, 1), const),                     # bh
            pl.BlockSpec((OP, HP), const),                    # Wo (padded to 8 rows)
            pl.BlockSpec((OP, 1), const),                     # bo
            pl.BlockSpec((OP, 1), const),                     # neg_lim
            pl.BlockSpec((OP, 1), const),                     # range
        ],
        out_specs=pl.BlockSpec((OP, tile_b), lambda i: (0, i)),
        compiler_params=pltpu.CompilerParams(
            dimension_semantics=("parallel",)),
    )(x0, kp["w1"], kp["b1"], kp["wh"], kp["bh"], kp["wo"], kp["bo"],
      kp["neg"], kp["rng"])

    return out[:O, :B].T                                      # (B, O)


# ----------------------------------------------------------------------------- reference
def d1mlp_reference(x, raw):
    """Pure-JAX reference matching the PyTorch forward exactly (torch layout)."""
    w1, b1, wh, bh, wo, bo, neg, pos, scale = raw
    h = x[:, 0:1] / scale[0]
    h = jnp.maximum(h @ w1.T + b1, 0.0)
    h = jnp.maximum(h @ wh.T + bh, 0.0)
    o = h @ wo.T + bo
    return jax.nn.sigmoid(o) * (pos - neg)[None] + neg[None]


if __name__ == "__main__":
    # Small shapes consistent with the module: batch=8, features=2, hidden=32, out=2.
    B, F, H, O = 8, 2, 32, 2
    neg_lim = [-1.0, -2.0]
    pos_lim = [1.0, 3.0]

    key = jax.random.PRNGKey(0)
    kx, kparam = jax.random.split(key)
    x = jax.random.normal(kx, (B, F), jnp.float32)

    raw_params = make_params(n_output=O, n_hidden=H,
                             neg_lim=neg_lim, pos_lim=pos_lim, key=kparam)

    # f32 matmul path: exact match against the reference.
    kp_f32 = prepare_kernel_params(raw_params, matmul_dtype=jnp.float32)
    out = jax.block_until_ready(d1mlp_forward(x, kp_f32))
    ref = d1mlp_reference(x, raw_params)
    assert out.shape == (B, O), out.shape
    assert jnp.allclose(out, ref, atol=1e-5, rtol=1e-5), "f32 mismatch vs reference"

    # Multi-tile / padding path (odd batch, >1 grid step) — still f32 exact.
    B2 = 513
    x2 = jax.random.normal(jax.random.PRNGKey(1), (B2, F), jnp.float32)
    out2 = jax.block_until_ready(d1mlp_forward(x2, kp_f32, max_tile_b=256))
    ref2 = d1mlp_reference(x2, raw_params)
    assert out2.shape == (B2, O), out2.shape
    assert jnp.allclose(out2, ref2, atol=1e-5, rtol=1e-5), "tiled f32 mismatch"

    # bf16 matmul path (f32 accumulation): small numerical deviation expected.
    kp_bf16 = prepare_kernel_params(raw_params, matmul_dtype=jnp.bfloat16)
    out_bf = jax.block_until_ready(d1mlp_forward(x, kp_bf16))
    assert jnp.allclose(out_bf, ref, atol=3e-2, rtol=0), "bf16 mismatch vs reference"

    print("KERNEL_OK")
</pallas_src>

<mosaic_0001>
module attributes {stable_mosaic.version = 11 : i64} {
  func.func @_d1mlp_kernel(%arg0: i32, %arg1: memref<1x128xf32, #tpu.memory_space<vmem>>, %arg2: memref<32x1xf32, #tpu.memory_space<vmem>>, %arg3: memref<32x1xf32, #tpu.memory_space<vmem>>, %arg4: memref<32x32xf32, #tpu.memory_space<vmem>>, %arg5: memref<32x1xf32, #tpu.memory_space<vmem>>, %arg6: memref<8x32xf32, #tpu.memory_space<vmem>>, %arg7: memref<8x1xf32, #tpu.memory_space<vmem>>, %arg8: memref<8x1xf32, #tpu.memory_space<vmem>>, %arg9: memref<8x1xf32, #tpu.memory_space<vmem>>, %arg10: memref<8x128xf32, #tpu.memory_space<vmem>>) attributes {dimension_semantics = [#tpu.dimension_semantics<parallel>], iteration_bounds = array<i64: 1>, scalar_prefetch = 0 : i64, scratch_operands = 0 : i64, tpu.core_type = #tpu.core_type<tc>, window_params = [{transform_indices = @transform_0, window_bounds = array<i64: 1, 128>}, {pipeline_mode = #tpu.pipeline_mode<synchronous>, transform_indices = @transform_1, window_bounds = array<i64: 32, 1>}, {pipeline_mode = #tpu.pipeline_mode<synchronous>, transform_indices = @transform_2, window_bounds = array<i64: 32, 1>}, {pipeline_mode = #tpu.pipeline_mode<synchronous>, transform_indices = @transform_3, window_bounds = array<i64: 32, 32>}, {pipeline_mode = #tpu.pipeline_mode<synchronous>, transform_indices = @transform_4, window_bounds = array<i64: 32, 1>}, {pipeline_mode = #tpu.pipeline_mode<synchronous>, transform_indices = @transform_5, window_bounds = array<i64: 8, 32>}, {pipeline_mode = #tpu.pipeline_mode<synchronous>, transform_indices = @transform_6, window_bounds = array<i64: 8, 1>}, {pipeline_mode = #tpu.pipeline_mode<synchronous>, transform_indices = @transform_7, window_bounds = array<i64: 8, 1>}, {pipeline_mode = #tpu.pipeline_mode<synchronous>, transform_indices = @transform_8, window_bounds = array<i64: 8, 1>}, {transform_indices = @transform_9, window_bounds = array<i64: 8, 128>}]} {
    %c0 = arith.constant 0 : index
    %c0_0 = arith.constant 0 : index
    %0 = vector.load %arg1[%c0, %c0_0] : memref<1x128xf32, #tpu.memory_space<vmem>>, vector<1x128xf32>
    %c0_1 = arith.constant 0 : index
    %c0_2 = arith.constant 0 : index
    %1 = vector.load %arg2[%c0_1, %c0_2] : memref<32x1xf32, #tpu.memory_space<vmem>>, vector<32x1xf32>
    %2 = vector.broadcast %1 : vector<32x1xf32> to vector<32x128xf32>
    %3 = vector.broadcast %0 : vector<1x128xf32> to vector<32x128xf32>
    %4 = arith.mulf %2, %3 : vector<32x128xf32>
    %c0_3 = arith.constant 0 : index
    %c0_4 = arith.constant 0 : index
    %5 = vector.load %arg3[%c0_3, %c0_4] : memref<32x1xf32, #tpu.memory_space<vmem>>, vector<32x1xf32>
    %6 = vector.broadcast %5 : vector<32x1xf32> to vector<32x128xf32>
    %7 = arith.addf %4, %6 : vector<32x128xf32>
    %cst = arith.constant 0.000000e+00 : f32
    %8 = vector.broadcast %cst : f32 to vector<32x128xf32>
    %9 = arith.maximumf %7, %8 : vector<32x128xf32>
    %c0_5 = arith.constant 0 : index
    %c0_6 = arith.constant 0 : index
    %10 = vector.load %arg4[%c0_5, %c0_6] : memref<32x32xf32, #tpu.memory_space<vmem>>, vector<32x32xf32>
    %cst_7 = arith.constant dense<0.000000e+00> : vector<32x128xf32>
    %11 = tpu.matmul %10, %9, %cst_7 {dimension_numbers = #tpu.dot_dimension_numbers<[1], [0], [0], [1], [0, 0, 1, 1], [], []>} : vector<32x32xf32>, vector<32x128xf32>, vector<32x128xf32> -> vector<32x128xf32>
    %c0_8 = arith.constant 0 : index
    %c0_9 = arith.constant 0 : index
    %12 = vector.load %arg5[%c0_8, %c0_9] : memref<32x1xf32, #tpu.memory_space<vmem>>, vector<32x1xf32>
    %13 = vector.broadcast %12 : vector<32x1xf32> to vector<32x128xf32>
    %14 = arith.addf %11, %13 : vector<32x128xf32>
    %cst_10 = arith.constant 0.000000e+00 : f32
    %15 = vector.broadcast %cst_10 : f32 to vector<32x128xf32>
    %16 = arith.maximumf %14, %15 : vector<32x128xf32>
    %c0_11 = arith.constant 0 : index
    %c0_12 = arith.constant 0 : index
    %17 = vector.load %arg6[%c0_11, %c0_12] : memref<8x32xf32, #tpu.memory_space<vmem>>, vector<8x32xf32>
    %cst_13 = arith.constant dense<0.000000e+00> : vector<8x128xf32>
    %18 = tpu.matmul %17, %16, %cst_13 {dimension_numbers = #tpu.dot_dimension_numbers<[1], [0], [0], [1], [0, 0, 1, 1], [], []>} : vector<8x32xf32>, vector<32x128xf32>, vector<8x128xf32> -> vector<8x128xf32>
    %c0_14 = arith.constant 0 : index
    %c0_15 = arith.constant 0 : index
    %19 = vector.load %arg7[%c0_14, %c0_15] : memref<8x1xf32, #tpu.memory_space<vmem>>, vector<8x1xf32>
    %20 = vector.broadcast %19 : vector<8x1xf32> to vector<8x128xf32>
    %21 = arith.addf %18, %20 : vector<8x128xf32>
    %22 = arith.negf %21 : vector<8x128xf32>
    %23 = math.exp %22 : vector<8x128xf32>
    %cst_16 = arith.constant 1.000000e+00 : f32
    %24 = vector.broadcast %cst_16 : f32 to vector<8x128xf32>
    %25 = arith.addf %24, %23 : vector<8x128xf32>
    %26 = arith.divf %24, %25 : vector<8x128xf32>
    %c0_17 = arith.constant 0 : index
    %c0_18 = arith.constant 0 : index
    %27 = vector.load %arg9[%c0_17, %c0_18] : memref<8x1xf32, #tpu.memory_space<vmem>>, vector<8x1xf32>
    %28 = vector.broadcast %27 : vector<8x1xf32> to vector<8x128xf32>
    %29 = arith.mulf %26, %28 : vector<8x128xf32>
    %c0_19 = arith.constant 0 : index
    %c0_20 = arith.constant 0 : index
    %30 = vector.load %arg8[%c0_19, %c0_20] : memref<8x1xf32, #tpu.memory_space<vmem>>, vector<8x1xf32>
    %31 = vector.broadcast %30 : vector<8x1xf32> to vector<8x128xf32>
    %32 = arith.addf %29, %31 : vector<8x128xf32>
    %c0_21 = arith.constant 0 : index
    %c0_22 = arith.constant 0 : index
    %33 = vector.load %arg10[%c0_21, %c0_22] : memref<8x128xf32, #tpu.memory_space<vmem>>, vector<8x128xf32>
    tpu.vector_store %arg10[%c0_21, %c0_22], %32 {strides = array<i32>} : memref<8x128xf32, #tpu.memory_space<vmem>>, vector<8x128xf32>,
    return
  }
  func.func @transform_0(%arg0: i32) -> (i32, i32) {
    %c0_i32 = arith.constant 0 : i32
    %c0_i32_0 = arith.constant 0 : i32
    return %c0_i32, %arg0 : i32, i32
  }
  func.func @transform_1(%arg0: i32) -> (i32, i32) {
    %c0_i32 = arith.constant 0 : i32
    %c0_i32_0 = arith.constant 0 : i32
    %c0_i32_1 = arith.constant 0 : i32
    return %c0_i32, %c0_i32_0 : i32, i32
  }
  func.func @transform_2(%arg0: i32) -> (i32, i32) {
    %c0_i32 = arith.constant 0 : i32
    %c0_i32_0 = arith.constant 0 : i32
    %c0_i32_1 = arith.constant 0 : i32
    return %c0_i32, %c0_i32_0 : i32, i32
  }
  func.func @transform_3(%arg0: i32) -> (i32, i32) {
    %c0_i32 = arith.constant 0 : i32
    %c0_i32_0 = arith.constant 0 : i32
    %c0_i32_1 = arith.constant 0 : i32
    return %c0_i32, %c0_i32_0 : i32, i32
  }
  func.func @transform_4(%arg0: i32) -> (i32, i32) {
    %c0_i32 = arith.constant 0 : i32
    %c0_i32_0 = arith.constant 0 : i32
    %c0_i32_1 = arith.constant 0 : i32
    return %c0_i32, %c0_i32_0 : i32, i32
  }
  func.func @transform_5(%arg0: i32) -> (i32, i32) {
    %c0_i32 = arith.constant 0 : i32
    %c0_i32_0 = arith.constant 0 : i32
    %c0_i32_1 = arith.constant 0 : i32
    return %c0_i32, %c0_i32_0 : i32, i32
  }
  func.func @transform_6(%arg0: i32) -> (i32, i32) {
    %c0_i32 = arith.constant 0 : i32
    %c0_i32_0 = arith.constant 0 : i32
    %c0_i32_1 = arith.constant 0 : i32
    return %c0_i32, %c0_i32_0 : i32, i32
  }
  func.func @transform_7(%arg0: i32) -> (i32, i32) {
    %c0_i32 = arith.constant 0 : i32
    %c0_i32_0 = arith.constant 0 : i32
    %c0_i32_1 = arith.constant 0 : i32
    return %c0_i32, %c0_i32_0 : i32, i32
  }
  func.func @transform_8(%arg0: i32) -> (i32, i32) {
    %c0_i32 = arith.constant 0 : i32
    %c0_i32_0 = arith.constant 0 : i32
    %c0_i32_1 = arith.constant 0 : i32
    return %c0_i32, %c0_i32_0 : i32, i32
  }
  func.func @transform_9(%arg0: i32) -> (i32, i32) {
    %c0_i32 = arith.constant 0 : i32
    %c0_i32_0 = arith.constant 0 : i32
    return %c0_i32, %arg0 : i32, i32
  }
}

</mosaic_0001>

<llo_original>
// kernel: tpu_custom_call.1
$region0: #{tpu_custom_call.1}
  #allocation0 [shape = 'u32[]', space=smem, size = 0x4, offset = 0x4, fixed_abs, tag = 'smem constant byte address 0x4 - core index']
  #allocation1 [shape = 'u32[144,128]{1,0:T(1,128)}', space=vmem, size = 0x12000, scoped, tag = 'internal scratch']
  %s0 = inlined_call_operand.vmem [shape: f32[1,128], index: 0, kind: input, shape index: {}]
  %s1 = inlined_call_operand.vmem [shape: f32[32,1], index: 1, kind: input, shape index: {}]
  %s2 = inlined_call_operand.vmem [shape: f32[32,1], index: 2, kind: input, shape index: {}]
  %s3 = inlined_call_operand.vmem [shape: f32[32,32], index: 3, kind: input, shape index: {}]
  %s4 = inlined_call_operand.vmem [shape: f32[32,1], index: 4, kind: input, shape index: {}]
  %s5 = inlined_call_operand.vmem [shape: f32[8,32], index: 5, kind: input, shape index: {}]
  %s6 = inlined_call_operand.vmem [shape: f32[8,1], index: 6, kind: input, shape index: {}]
  %s7 = inlined_call_operand.vmem [shape: f32[8,1], index: 7, kind: input, shape index: {}]
  %s8 = inlined_call_operand.vmem [shape: f32[8,1], index: 8, kind: input, shape index: {}]
  %s9 = inlined_call_operand.hbm [shape: f32[8,128], index: 9, kind: output, shape index: {}]
  %s10 = sld [smem:[#allocation0]]
  $region46: #{tpu_custom_call.1} parent=0
    _
  %s12 = ssub.s32 1, %s10
  %s13 = scalar_select 0, %s12, %s10
  $region1: #{tpu_custom_call.1} parent=0
    #allocation2 [shape = 'u8[4096]{0}', space=vmem, size = 0x1000, scoped, tag = 'output window, operand 0, single buffered']
    #allocation3 [shape = 's32[1]{0}', space=sflag, size = 0x4, scoped, tag = 'scoped memory for tpu_custom_call.1']
    %14 = vsyncpa [#allocation3], 0
    // Predicated region
    $region2: #{tpu_custom_call.1} parent=1 // pred_check
      _
    $region3: #{tpu_custom_call.1} parent=1 // pred_check_branch
      %16 = sbr.rel (0) target = $region5
    $region4: #{tpu_custom_call.1} parent=1 // pred_region
      _
    $region5: #{tpu_custom_call.1} parent=1 // pred_fallthru
      _
    // Predicated region
    $region6: #{tpu_custom_call.1} parent=1 // pred_check
      _
    $region7: #{tpu_custom_call.1} parent=1 // pred_check_branch
      %18 = sbr.rel (0) target = $region9
    $region8: #{tpu_custom_call.1} parent=1 // pred_region
      _
    $region9: #{tpu_custom_call.1} parent=1 // pred_fallthru
      _
    // Predicated region
    $region10: #{tpu_custom_call.1} parent=1 // pred_check
      _
    $region11: #{tpu_custom_call.1} parent=1 // pred_check_branch
      %20 = sbr.rel (0) target = $region13
    $region12: #{tpu_custom_call.1} parent=1 // pred_region
      _
    $region13: #{tpu_custom_call.1} parent=1 // pred_fallthru
      _
    // Predicated region
    $region14: #{tpu_custom_call.1} parent=1 // pred_check
      _
    $region15: #{tpu_custom_call.1} parent=1 // pred_check_branch
      %22 = sbr.rel (0) target = $region17
    $region16: #{tpu_custom_call.1} parent=1 // pred_region
      _
    $region17: #{tpu_custom_call.1} parent=1 // pred_fallthru
      _
    // Predicated region
    $region18: #{tpu_custom_call.1} parent=1 // pred_check
      _
    $region19: #{tpu_custom_call.1} parent=1 // pred_check_branch
      %24 = sbr.rel (0) target = $region21
    $region20: #{tpu_custom_call.1} parent=1 // pred_region
      _
    $region21: #{tpu_custom_call.1} parent=1 // pred_fallthru
      _
    // Predicated region
    $region22: #{tpu_custom_call.1} parent=1 // pred_check
      _
    $region23: #{tpu_custom_call.1} parent=1 // pred_check_branch
      %26 = sbr.rel (0) target = $region25
    $region24: #{tpu_custom_call.1} parent=1 // pred_region
      _
    $region25: #{tpu_custom_call.1} parent=1 // pred_fallthru
      _
    // Predicated region
    $region26: #{tpu_custom_call.1} parent=1 // pred_check
      _
    $region27: #{tpu_custom_call.1} parent=1 // pred_check_branch
      %28 = sbr.rel (0) target = $region29
    $region28: #{tpu_custom_call.1} parent=1 // pred_region
      _
    $region29: #{tpu_custom_call.1} parent=1 // pred_fallthru
      _
    // Predicated region
    $region30: #{tpu_custom_call.1} parent=1 // pred_check
      _
    $region31: #{tpu_custom_call.1} parent=1 // pred_check_branch
      %30 = sbr.rel (0) target = $region33
    $region32: #{tpu_custom_call.1} parent=1 // pred_region
      _
    $region33: #{tpu_custom_call.1} parent=1 // pred_fallthru
      _
    // Predicated region
    $region34: #{tpu_custom_call.1} parent=1 // pred_check
      _
    $region35: #{tpu_custom_call.1} parent=1 // pred_check_branch
      %32 = sbr.rel (0) target = $region37
    $region36: #{tpu_custom_call.1} parent=1 // pred_region
      _
    $region37: #{tpu_custom_call.1} parent=1 // pred_fallthru
      _
    %v33 = vld [vmem:[%s0] sm:$0x1]
    %v34 = vld [vmem:[%s1] sm:$0xff]
    %v35 = vld [vmem:[%s1 + $0x8] sm:$0xff]
    %v36 = vld [vmem:[%s1 + $0x10] sm:$0xff]
    %v37 = vld [vmem:[%s1 + $0x18] sm:$0xff]
    %39 = vset.pattern.permute.xlu0 0
    %40 = vperm.xlu0 %39, %v34
    %v41 = vpop.permute.xlu0 %40
    %44 = vset.pattern.permute.xlu0 0
    %45 = vperm.xlu0 %44, %v35
    %v46 = vpop.permute.xlu0 %45
    %49 = vset.pattern.permute.xlu0 0
    %50 = vperm.xlu0 %49, %v36
    %v51 = vpop.permute.xlu0 %50
    %54 = vset.pattern.permute.xlu0 0
    %55 = vperm.xlu0 %54, %v37
    %v56 = vpop.permute.xlu0 %55
    %v59 = vlaneseq
    %v60 = vshrl.u32 %v59, 7
    %v61 = vsub.s32 0, %v60
    %v62 = vrot.slane %v33, %v61
    %v64 = vmul.f32 %v41, %v62
    %v65 = vmul.f32 %v46, %v62
    %v66 = vmul.f32 %v51, %v62
    %v67 = vmul.f32 %v56, %v62
    %v68 = vld [vmem:[%s2] sm:$0xff]
    %v69 = vld [vmem:[%s2 + $0x8] sm:$0xff]
    %v70 = vld [vmem:[%s2 + $0x10] sm:$0xff]
    %v71 = vld [vmem:[%s2 + $0x18] sm:$0xff]
    %73 = vset.pattern.permute.xlu0 0
    %74 = vperm.xlu0 %73, %v68
    %v75 = vpop.permute.xlu0 %74
    %78 = vset.pattern.permute.xlu0 0
    %79 = vperm.xlu0 %78, %v69
    %v80 = vpop.permute.xlu0 %79
    %83 = vset.pattern.permute.xlu0 0
    %84 = vperm.xlu0 %83, %v70
    %v85 = vpop.permute.xlu0 %84
    %88 = vset.pattern.permute.xlu0 0
    %89 = vperm.xlu0 %88, %v71
    %v90 = vpop.permute.xlu0 %89
    %v92 = vadd.f32 %v64, %v75
    %v93 = vadd.f32 %v65, %v80
    %v94 = vadd.f32 %v66, %v85
    %v95 = vadd.f32 %v67, %v90
    %v96 = vmax.f32 %v92, 0.0
    %v97 = vmax.f32 %v93, 0.0
    %v98 = vmax.f32 %v94, 0.0
    %v99 = vmax.f32 %v95, 0.0
    %v100 = vld [vmem:[%s3] sm:$0xff]
    %v101 = vld [vmem:[%s3 + $0x8] sm:$0xff]
    %v102 = vld [vmem:[%s3 + $0x10] sm:$0xff]
    %v103 = vld [vmem:[%s3 + $0x18] sm:$0xff]
    %v104 = vld [vmem:[%s4] sm:$0xff]
    %v105 = vld [vmem:[%s4 + $0x8] sm:$0xff]
    %v106 = vld [vmem:[%s4 + $0x10] sm:$0xff]
    %v107 = vld [vmem:[%s4 + $0x18] sm:$0xff]
    %109 = vset.pattern.permute.xlu0 0
    %110 = vperm.xlu0 %109, %v104
    %v111 = vpop.permute.xlu0 %110
    %114 = vset.pattern.permute.xlu0 0
    %115 = vperm.xlu0 %114, %v105
    %v116 = vpop.permute.xlu0 %115
    %119 = vset.pattern.permute.xlu0 0
    %120 = vperm.xlu0 %119, %v106
    %v121 = vpop.permute.xlu0 %120
    %124 = vset.pattern.permute.xlu0 0
    %125 = vperm.xlu0 %124, %v107
    %v126 = vpop.permute.xlu0 %125
    %vm128 = vcmask 261120
    %v130 = vsel %vm128, %v100, 0
    %v133 = vsel %vm128, %v101, 0
    %v136 = vsel %vm128, %v102, 0
    %v139 = vsel %vm128, %v103, 0
    %141 = vmatprep.subr.mxu0 0.0
    %142 = vmatpush1.msra.mxu0 %v96
    %143 = vmatprep.subr.mxu0 0.0
    %144 = vmatpush1.msra.mxu0 %v97
    %145 = vmatprep.subr.mxu0 0.0
    %146 = vmatpush1.msra.mxu0 %v98
    %147 = vmatprep.subr.mxu0 0.0
    %148 = vmatpush1.msra.mxu0 %v99
    %149 = vmatprep.subr.mxu0 0.0
    %150 = vmatpush1.msra.mxu0 0.0
    %151 = vmatprep.subr.mxu0 0.0
    %152 = vmatpush1.msra.mxu0 0.0
    %153 = vmatprep.subr.mxu0 0.0
    %154 = vmatpush1.msra.mxu0 0.0
    %155 = vmatprep.subr.mxu0 0.0
    %156 = vmatpush1.msra.mxu0 0.0
    %157 = vmatprep.subr.mxu0 0.0
    %158 = vmatpush1.msra.mxu0 0.0
    %159 = vmatprep.subr.mxu0 0.0
    %160 = vmatpush1.msra.mxu0 0.0
    %161 = vmatprep.subr.mxu0 0.0
    %162 = vmatpush1.msra.mxu0 0.0
    %163 = vmatprep.subr.mxu0 0.0
    %164 = vmatpush1.msra.mxu0 0.0
    %165 = vmatprep.subr.mxu0 0.0
    %166 = vmatpush1.msra.mxu0 0.0
    %167 = vmatprep.subr.mxu0 0.0
    %168 = vmatpush1.msra.mxu0 0.0
    %169 = vmatprep.subr.mxu0 0.0
    %170 = vmatpush1.msra.mxu0 0.0
    %171 = vmatprep.subr.mxu0 0.0
    %172 = vmatpush1.msra.mxu0 0.0
    %173 = vmatprep.subr.mxu0 0.0
    %174 = vmatpush1.msra.mxu0 0.0
    %175 = vmatprep.subr.mxu0 0.0
    %176 = vmatpush1.msra.mxu0 0.0
    %177 = vmatprep.subr.mxu0 0.0
    %178 = vmatpush1.msra.mxu0 0.0
    %179 = vmatprep.subr.mxu0 0.0
    %180 = vmatpush1.msra.mxu0 0.0
    %181 = vmatprep.subr.mxu0 0.0
    %182 = vmatpush1.msra.mxu0 0.0
    %183 = vmatprep.subr.mxu0 0.0
    %184 = vmatpush1.msra.mxu0 0.0
    %185 = vmatprep.subr.mxu0 0.0
    %186 = vmatpush1.msra.mxu0 0.0
    %187 = vmatprep.subr.mxu0 0.0
    %188 = vmatpush1.msra.mxu0 0.0
    %189 = vmatprep.subr.mxu0 0.0
    %190 = vmatpush1.msra.mxu0 0.0
    %191 = vmatprep.subr.mxu0 0.0
    %192 = vmatpush1.msra.mxu0 0.0
    %193 = vmatprep.subr.mxu0 0.0
    %194 = vmatpush1.msra.mxu0 0.0
    %195 = vmatprep.subr.mxu0 0.0
    %196 = vmatpush1.msra.mxu0 0.0
    %197 = vmatprep.subr.mxu0 0.0
    %198 = vmatpush1.msra.mxu0 0.0
    %199 = vmatprep.subr.mxu0 0.0
    %200 = vmatpush1.msra.mxu0 0.0
    %201 = vmatprep.subr.mxu0 0.0
    %202 = vmatpush1.msra.mxu0 0.0
    %203 = vmatprep.subr.mxu0 0.0
    %204 = vmatpush1.msra.mxu0 0.0
    %205 = vmatprep.mubr.f32.mxu0 0.0
    %206 = vmatmul.mubr.f32.gmra.mrb[0].mxu0 %v130
    %v207 = vpop.f32.mrb[0].mxu0
    %v208 = vadd.f32 %v111, %v207
    %v209 = vpop.f32.mrb[0].mxu0
    %210 = vmatprep.mubr.f32.mxu0 0.0
    %211 = vmatmul.mubr.f32.gmra.mrb[0].mxu0 %v133
    %v212 = vpop.f32.mrb[0].mxu0
    %v213 = vadd.f32 %v116, %v212
    %v214 = vpop.f32.mrb[0].mxu0
    %215 = vmatprep.mubr.f32.mxu0 0.0
    %216 = vmatmul.mubr.f32.gmra.mrb[0].mxu0 %v136
    %v217 = vpop.f32.mrb[0].mxu0
    %v218 = vadd.f32 %v121, %v217
    %v219 = vpop.f32.mrb[0].mxu0
    %220 = vmatprep.mubr.f32.mxu0 0.0
    %221 = vmatmul.mubr.f32.gmra.mrb[0].mxu0 %v139
    %v222 = vpop.f32.mrb[0].mxu0
    %v223 = vadd.f32 %v126, %v222
    %v224 = vpop.f32.mrb[0].mxu0
    %225 = vdwg.mxu0
    %v226 = vmax.f32 %v208, 0.0
    %v227 = vmax.f32 %v213, 0.0
    %v228 = vmax.f32 %v218, 0.0
    %v229 = vmax.f32 %v223, 0.0
    %v230 = vld [vmem:[%s5] sm:$0xff]
    %v231 = vld [vmem:[%s6] sm:$0xff]
    %233 = vset.pattern.permute.xlu0 0
    %234 = vperm.xlu0 %233, %v231
    %v235 = vpop.permute.xlu0 %234
    %v238 = vsel %vm128, %v230, 0
    %240 = vmatprep.subr.mxu0 0.0
    %241 = vmatpush1.msra.mxu0 %v226
    %242 = vmatprep.subr.mxu0 0.0
    %243 = vmatpush1.msra.mxu0 %v227
    %244 = vmatprep.subr.mxu0 0.0
    %245 = vmatpush1.msra.mxu0 %v228
    %246 = vmatprep.subr.mxu0 0.0
    %247 = vmatpush1.msra.mxu0 %v229
    %248 = vmatprep.subr.mxu0 0.0
    %249 = vmatpush1.msra.mxu0 0.0
    %250 = vmatprep.subr.mxu0 0.0
    %251 = vmatpush1.msra.mxu0 0.0
    %252 = vmatprep.subr.mxu0 0.0
    %253 = vmatpush1.msra.mxu0 0.0
    %254 = vmatprep.subr.mxu0 0.0
    %255 = vmatpush1.msra.mxu0 0.0
    %256 = vmatprep.subr.mxu0 0.0
    %257 = vmatpush1.msra.mxu0 0.0
    %258 = vmatprep.subr.mxu0 0.0
    %259 = vmatpush1.msra.mxu0 0.0
    %260 = vmatprep.subr.mxu0 0.0
    %261 = vmatpush1.msra.mxu0 0.0
    %262 = vmatprep.subr.mxu0 0.0
    %263 = vmatpush1.msra.mxu0 0.0
    %264 = vmatprep.subr.mxu0 0.0
    %265 = vmatpush1.msra.mxu0 0.0
    %266 = vmatprep.subr.mxu0 0.0
    %267 = vmatpush1.msra.mxu0 0.0
    %268 = vmatprep.subr.mxu0 0.0
    %269 = vmatpush1.msra.mxu0 0.0
    %270 = vmatprep.subr.mxu0 0.0
    %271 = vmatpush1.msra.mxu0 0.0
    %272 = vmatprep.subr.mxu0 0.0
    %273 = vmatpush1.msra.mxu0 0.0
    %274 = vmatprep.subr.mxu0 0.0
    %275 = vmatpush1.msra.mxu0 0.0
    %276 = vmatprep.subr.mxu0 0.0
    %277 = vmatpush1.msra.mxu0 0.0
    %278 = vmatprep.subr.mxu0 0.0
    %279 = vmatpush1.msra.mxu0 0.0
    %280 = vmatprep.subr.mxu0 0.0
    %281 = vmatpush1.msra.mxu0 0.0
    %282 = vmatprep.subr.mxu0 0.0
    %283 = vmatpush1.msra.mxu0 0.0
    %284 = vmatprep.subr.mxu0 0.0
    %285 = vmatpush1.msra.mxu0 0.0
    %286 = vmatprep.subr.mxu0 0.0
    %287 = vmatpush1.msra.mxu0 0.0
    %288 = vmatprep.subr.mxu0 0.0
    %289 = vmatpush1.msra.mxu0 0.0
    %290 = vmatprep.subr.mxu0 0.0
    %291 = vmatpush1.msra.mxu0 0.0
    %292 = vmatprep.subr.mxu0 0.0
    %293 = vmatpush1.msra.mxu0 0.0
    %294 = vmatprep.subr.mxu0 0.0
    %295 = vmatpush1.msra.mxu0 0.0
    %296 = vmatprep.subr.mxu0 0.0
    %297 = vmatpush1.msra.mxu0 0.0
    %298 = vmatprep.subr.mxu0 0.0
    %299 = vmatpush1.msra.mxu0 0.0
    %300 = vmatprep.subr.mxu0 0.0
    %301 = vmatpush1.msra.mxu0 0.0
    %302 = vmatprep.subr.mxu0 0.0
    %303 = vmatpush1.msra.mxu0 0.0
    %304 = vmatprep.mubr.f32.mxu0 0.0
    %305 = vmatmul.mubr.f32.gmra.mrb[0].mxu0 %v238
    %v306 = vpop.f32.mrb[0].mxu0
    %v307 = vadd.f32 %v235, %v306
    %v308 = vpop.f32.mrb[0].mxu0
    %309 = vdwg.mxu0
    %v310 = vxor.u32 %v307, 2147483648
    %v311 = vmul.f32 %v310, 1.442695
    %v312 = vpow.pop %v311
    %v313 = vadd.f32 %v312, 1.0
    %v314 = vrcp.pop %v313
    %v315 = vmul.f32 1.0, %v314
    %v316 = vld [vmem:[%s8] sm:$0xff]
    %318 = vset.pattern.permute.xlu0 0
    %319 = vperm.xlu0 %318, %v316
    %v320 = vpop.permute.xlu0 %319
    %v322 = vmul.f32 %v315, %v320
    %v323 = vld [vmem:[%s7] sm:$0xff]
    %325 = vset.pattern.permute.xlu0 0
    %326 = vperm.xlu0 %325, %v323
    %v327 = vpop.permute.xlu0 %326
    %v329 = vadd.f32 %v322, %v327
    %330 = vst [vmem:[#allocation2] sm:$0xff] %v329
    // Predicated region
    $region38: #{tpu_custom_call.1} parent=1 // pred_check
      _
    $region39: #{tpu_custom_call.1} parent=1 // pred_check_branch
      %332 = sbr.rel (0) target = $region41
    $region40: #{tpu_custom_call.1} parent=1 // pred_region
      %s334 = ssub.s32 128, 128
      %335 = vsyncadd [#allocation3], %s334
      %s337 = sshll.u32 [#allocation2], 4
      %s338 = int_to_ptr.vmem [resolvable:$true] %s337
      %340 = dma.vmem_to_hbm [thread:$0]  %s338, 128, %s9, [#allocation3]
    $region41: #{tpu_custom_call.1} parent=1 // pred_fallthru
      _
    // Predicated region
    $region42: #{tpu_custom_call.1} parent=1 // pred_check
      _
    $region43: #{tpu_custom_call.1} parent=1 // pred_check_branch
      %342 = sbr.rel (0) target = $region45
    $region44: #{tpu_custom_call.1} parent=1 // pred_region
      %343 = dma.done [#allocation3], 128
    $region45: #{tpu_custom_call.1} parent=1 // pred_fallthru
      _
    %344 = vsyncpa [#allocation3], 1

</llo_original>
